<compile_context>
chip_gen: v5e
topology: v5e:2x2
jax: 0.10.0
libtpu: 0.0.40
codegen_flags: <defaults>
</compile_context>

<pallas_src>
import jax
import jax.numpy as jnp
from jax.experimental import pallas as pl
from jax.experimental.pallas import tpu as pltpu

_MiB = 1024 * 1024


def _round_up(a, b):
    return ((a + b - 1) // b) * b


def _cdiv(a, b):
    return (a + b - 1) // b


def _device_kind():
    try:
        return jax.devices()[0].device_kind.lower()
    except Exception:
        return ""


def _is_v7x(kind):
    return ("v7" in kind) or ("7x" in kind)


def _physical_vmem_bytes(kind):
    try:
        cap = getattr(pltpu.get_tpu_info(), "vmem_capacity_bytes", None)
        if cap:
            return int(cap)
    except Exception:
        pass
    return 64 * _MiB if _is_v7x(kind) else 128 * _MiB


def _make_mlp_kernel(hidden, chunk):
    """x @ W1 + b1 -> ReLU -> @ W2 + b2, hidden axis processed `chunk` cols at a time."""

    def kernel(x_ref, w1_ref, b1_ref, w2_ref, b2_ref, o_ref):
        # Match MXU operand dtypes to the weights (explicit cast policy: bf16
        # weights => bf16 matmuls on both layers); accumulate in f32.
        x = x_ref[...].astype(w1_ref.dtype)
        y = None
        for c0 in range(0, hidden, chunk):
            c1 = min(c0 + chunk, hidden)
            h = jnp.dot(x, w1_ref[:, c0:c1], preferred_element_type=jnp.float32)
            h = h + b1_ref[:, c0:c1].astype(jnp.float32)
            h = jnp.maximum(h, 0.0)
            part = jnp.dot(h.astype(w2_ref.dtype), w2_ref[c0:c1, :],
                           preferred_element_type=jnp.float32)
            y = part if y is None else y + part
        y = y + b2_ref[...].astype(jnp.float32)
        o_ref[...] = y.astype(o_ref.dtype)

    return kernel


def _build_call(x2d, w1, b1, w2, b2, *, tm_eff, chunk, semantics,
                single_buffer_weights, vmem_limit_bytes):
    m, d_model = x2d.shape
    hidden = w1.shape[1]
    grid = (_cdiv(m, tm_eff),)

    wkw = dict(pipeline_mode=pl.Buffered(1)) if single_buffer_weights else {}
    in_specs = [
        # Activations: tiled along tokens (double-buffered by Pallas).
        pl.BlockSpec((tm_eff, d_model), lambda i: (i, 0)),
        # Weights/biases: constant index_map -> resident in VMEM (1 buffer).
        pl.BlockSpec((d_model, hidden), lambda i: (0, 0), **wkw),
        pl.BlockSpec((1, hidden), lambda i: (0, 0), **wkw),
        pl.BlockSpec((hidden, d_model), lambda i: (0, 0), **wkw),
        pl.BlockSpec((1, d_model), lambda i: (0, 0), **wkw),
    ]
    call = pl.pallas_call(
        _make_mlp_kernel(hidden, chunk),
        out_shape=jax.ShapeDtypeStruct((m, d_model), x2d.dtype),
        grid_spec=pltpu.PrefetchScalarGridSpec(
            num_scalar_prefetch=0,
            grid=grid,
            in_specs=in_specs,
            out_specs=pl.BlockSpec((tm_eff, d_model), lambda i: (i, 0)),
        ),
        compiler_params=pltpu.CompilerParams(
            dimension_semantics=semantics,
            vmem_limit_bytes=vmem_limit_bytes,
        ),
    )
    return call(x2d, w1, b1, w2, b2)


def imitation_network_forward(x, w1, b1, w2, b2, *, tm=1024,
                              hidden_chunk=2048, vmem_limit_bytes=None):
    """x: (..., d_model) -> (..., d_model). Weights stored [in, out]."""
    d_model = x.shape[-1]
    hidden = w1.shape[-1]
    lead = x.shape[:-1]

    x2d = x.reshape(-1, d_model)
    m = x2d.shape[0]

    kind = _device_kind()
    is_v7x = _is_v7x(kind)
    phys = _physical_vmem_bytes(kind)
    # Per-generation cap with headroom for compiler scratch (v5e/v6e ~96 MiB,
    # v7x ~40 MiB).
    vmem_cap = max(24 * _MiB, min(phys - 24 * _MiB, (phys * 3) // 4))

    # Hidden-dim chunk keeps the f32 intermediate bounded for big d_model.
    chunk = hidden if hidden <= hidden_chunk else hidden_chunk

    w_item = jnp.dtype(w1.dtype).itemsize
    x_item = jnp.dtype(x.dtype).itemsize

    def est_bytes(t, weight_bufs):
        w_bytes = weight_bufs * (d_model * hidden + hidden
                                 + hidden * d_model + d_model) * w_item
        act_bytes = 2 * 2 * t * d_model * x_item      # x + out tiles, double-buffered
        h_bytes = t * chunk * (4 + w_item)            # f32 h + cast copy
        y_bytes = t * d_model * 4                     # f32 accumulator
        return w_bytes + act_bytes + h_bytes + y_bytes

    # Token tile: multiple of 8 sublanes, capped by the token count, shrunk
    # until the footprint (single-buffered weights) fits the per-gen VMEM cap.
    tm_eff = max(8, min(_round_up(tm, 8), _round_up(m, 8)))
    while tm_eff > 64 and int(1.3 * est_bytes(tm_eff, 1)) > vmem_cap:
        tm_eff = max(64, _round_up(tm_eff // 2, 8))

    # v7x has 2 TensorCores: make sure single-tile inputs become >= 2 tiles so
    # CORE_PARALLEL has something to shard.
    if is_v7x and _cdiv(m, tm_eff) == 1 and m >= 16:
        tm_eff = max(8, _round_up(_cdiv(m, 2), 8))

    n_tiles = _cdiv(m, tm_eff)

    core_par = getattr(pltpu, "CORE_PARALLEL", None)
    attempts = []
    if is_v7x and core_par is not None and n_tiles >= 2:
        attempts.append((True, (core_par,)))
    attempts.append((True, ("parallel",)))     # preferred everywhere else
    attempts.append((False, ("parallel",)))    # fallback: no pipeline_mode
    attempts.append((False, ("arbitrary",)))

    out = None
    last_err = None
    for single_buf, semantics in attempts:
        limit = vmem_limit_bytes
        if limit is None:
            limit = int(min(max(1.3 * est_bytes(tm_eff, 1 if single_buf else 2),
                                24 * _MiB), vmem_cap))
        try:
            out = _build_call(x2d, w1, b1, w2, b2, tm_eff=tm_eff, chunk=chunk,
                              semantics=semantics,
                              single_buffer_weights=single_buf,
                              vmem_limit_bytes=limit)
            break
        except Exception as e:   # unsupported option on this jax/TPU -> fall back
            last_err = e
    if out is None:
        raise last_err

    return out.reshape(*lead, d_model)


def init_params(key, d_model, dtype=jnp.float32):
    """Deterministic init mimicking nn.Linear's U(-1/sqrt(fan_in), 1/sqrt(fan_in))."""
    k1, k2, k3, k4 = jax.random.split(key, 4)
    hidden = 2 * d_model
    bound1 = 1.0 / (d_model ** 0.5)
    bound2 = 1.0 / (hidden ** 0.5)
    # Stored as [in_features, out_features] (transpose of PyTorch's layout).
    # For best store throughput keep d_model a multiple of 128 (lane-dense).
    w1 = jax.random.uniform(k1, (d_model, hidden), dtype, -bound1, bound1)
    b1 = jax.random.uniform(k2, (1, hidden), dtype, -bound1, bound1)
    w2 = jax.random.uniform(k3, (hidden, d_model), dtype, -bound2, bound2)
    b2 = jax.random.uniform(k4, (1, d_model), dtype, -bound2, bound2)
    return w1, b1, w2, b2


def _reference(x, w1, b1, w2, b2):
    xf = x.astype(jnp.float32)
    h = jnp.maximum(xf @ w1.astype(jnp.float32) + b1[0].astype(jnp.float32), 0.0)
    return h @ w2.astype(jnp.float32) + b2[0].astype(jnp.float32)


if __name__ == "__main__":
    key = jax.random.PRNGKey(0)
    kx, kp, kx2, kp2 = jax.random.split(key, 4)

    # --- Small f32 check (d_model=32, one tile) ---
    batch, seq, d_model = 2, 8, 32
    x = jax.random.normal(kx, (batch, seq, d_model), jnp.float32)
    w1, b1, w2, b2 = init_params(kp, d_model)
    y = jax.block_until_ready(imitation_network_forward(x, w1, b1, w2, b2))
    ref = _reference(x, w1, b1, w2, b2)
    assert y.shape == (batch, seq, d_model)
    assert jnp.allclose(y, ref, atol=1e-5, rtol=1e-5)

    # --- Multi-tile, ragged token count (no wrapper padding): d_model=128, TM=64 ---
    batch2, seq2, d_model2 = 4, 40, 128   # m = 160 tokens -> 3 tiles of 64 (last masked)
    x2 = jax.random.normal(kx2, (batch2, seq2, d_model2), jnp.float32)
    p2 = init_params(kp2, d_model2)
    y2 = jax.block_until_ready(imitation_network_forward(x2, *p2, tm=64))
    ref2 = _reference(x2, *p2)
    assert y2.shape == (batch2, seq2, d_model2)
    assert jnp.allclose(y2, ref2, atol=1e-4, rtol=1e-4)

    # --- Hidden-dim chunked path (forced small chunk to exercise the loop) ---
    y2c = jax.block_until_ready(
        imitation_network_forward(x2, *p2, tm=64, hidden_chunk=128))
    assert jnp.allclose(y2c, ref2, atol=1e-4, rtol=1e-4)

    # --- bf16 params/activations (bf16 MXU operands on both layers, f32 accumulate) ---
    xb = x2.astype(jnp.bfloat16)
    pb = tuple(p.astype(jnp.bfloat16) for p in p2)
    yb = jax.block_until_ready(imitation_network_forward(xb, *pb, tm=64))
    refb = _reference(xb, *pb)
    assert jnp.allclose(yb.astype(jnp.float32), refb, atol=5e-2, rtol=5e-2)

    print("KERNEL_OK")
</pallas_src>

<mosaic_0001>
module attributes {stable_mosaic.version = 11 : i64} {
  func.func @kernel(%arg0: i32, %arg1: memref<16x32xf32, #tpu.memory_space<vmem>>, %arg2: memref<32x64xf32, #tpu.memory_space<vmem>>, %arg3: memref<1x64xf32, #tpu.memory_space<vmem>>, %arg4: memref<64x32xf32, #tpu.memory_space<vmem>>, %arg5: memref<1x32xf32, #tpu.memory_space<vmem>>, %arg6: memref<16x32xf32, #tpu.memory_space<vmem>>) attributes {dimension_semantics = [#tpu.dimension_semantics<parallel>], iteration_bounds = array<i64: 1>, scalar_prefetch = 0 : i64, scratch_operands = 0 : i64, tpu.core_type = #tpu.core_type<tc>, window_params = [{transform_indices = @transform_0, window_bounds = array<i64: 16, 32>}, {pipeline_mode = #tpu.pipeline_mode<synchronous>, transform_indices = @transform_1, window_bounds = array<i64: 32, 64>}, {pipeline_mode = #tpu.pipeline_mode<synchronous>, transform_indices = @transform_2, window_bounds = array<i64: 1, 64>}, {pipeline_mode = #tpu.pipeline_mode<synchronous>, transform_indices = @transform_3, window_bounds = array<i64: 64, 32>}, {pipeline_mode = #tpu.pipeline_mode<synchronous>, transform_indices = @transform_4, window_bounds = array<i64: 1, 32>}, {transform_indices = @transform_5, window_bounds = array<i64: 16, 32>}]} {
    %c0 = arith.constant 0 : index
    %c0_0 = arith.constant 0 : index
    %0 = vector.load %arg1[%c0, %c0_0] : memref<16x32xf32, #tpu.memory_space<vmem>>, vector<16x32xf32>
    %c0_1 = arith.constant 0 : index
    %c0_2 = arith.constant 0 : index
    %1 = vector.load %arg2[%c0_1, %c0_2] : memref<32x64xf32, #tpu.memory_space<vmem>>, vector<32x64xf32>
    %cst = arith.constant dense<0.000000e+00> : vector<16x64xf32>
    %2 = tpu.matmul %0, %1, %cst {dimension_numbers = #tpu.dot_dimension_numbers<[1], [0], [0], [1], [0, 0, 1, 1], [], []>} : vector<16x32xf32>, vector<32x64xf32>, vector<16x64xf32> -> vector<16x64xf32>
    %c0_3 = arith.constant 0 : index
    %c0_4 = arith.constant 0 : index
    %3 = vector.load %arg3[%c0_3, %c0_4] : memref<1x64xf32, #tpu.memory_space<vmem>>, vector<1x64xf32>
    %4 = vector.broadcast %3 : vector<1x64xf32> to vector<16x64xf32>
    %5 = arith.addf %2, %4 : vector<16x64xf32>
    %cst_5 = arith.constant 0.000000e+00 : f32
    %6 = vector.broadcast %cst_5 : f32 to vector<16x64xf32>
    %7 = arith.maximumf %5, %6 : vector<16x64xf32>
    %c0_6 = arith.constant 0 : index
    %c0_7 = arith.constant 0 : index
    %8 = vector.load %arg4[%c0_6, %c0_7] : memref<64x32xf32, #tpu.memory_space<vmem>>, vector<64x32xf32>
    %cst_8 = arith.constant dense<0.000000e+00> : vector<16x32xf32>
    %9 = tpu.matmul %7, %8, %cst_8 {dimension_numbers = #tpu.dot_dimension_numbers<[1], [0], [0], [1], [0, 0, 1, 1], [], []>} : vector<16x64xf32>, vector<64x32xf32>, vector<16x32xf32> -> vector<16x32xf32>
    %c0_9 = arith.constant 0 : index
    %c0_10 = arith.constant 0 : index
    %10 = vector.load %arg5[%c0_9, %c0_10] : memref<1x32xf32, #tpu.memory_space<vmem>>, vector<1x32xf32>
    %11 = vector.broadcast %10 : vector<1x32xf32> to vector<16x32xf32>
    %12 = arith.addf %9, %11 : vector<16x32xf32>
    %c0_11 = arith.constant 0 : index
    %c0_12 = arith.constant 0 : index
    %13 = vector.load %arg6[%c0_11, %c0_12] : memref<16x32xf32, #tpu.memory_space<vmem>>, vector<16x32xf32>
    tpu.vector_store %arg6[%c0_11, %c0_12], %12 {strides = array<i32>} : memref<16x32xf32, #tpu.memory_space<vmem>>, vector<16x32xf32>,
    return
  }
  func.func @transform_0(%arg0: i32) -> (i32, i32) {
    %c0_i32 = arith.constant 0 : i32
    %c0_i32_0 = arith.constant 0 : i32
    return %arg0, %c0_i32 : i32, i32
  }
  func.func @transform_1(%arg0: i32) -> (i32, i32) {
    %c0_i32 = arith.constant 0 : i32
    %c0_i32_0 = arith.constant 0 : i32
    %c0_i32_1 = arith.constant 0 : i32
    return %c0_i32, %c0_i32_0 : i32, i32
  }
  func.func @transform_2(%arg0: i32) -> (i32, i32) {
    %c0_i32 = arith.constant 0 : i32
    %c0_i32_0 = arith.constant 0 : i32
    %c0_i32_1 = arith.constant 0 : i32
    return %c0_i32, %c0_i32_0 : i32, i32
  }
  func.func @transform_3(%arg0: i32) -> (i32, i32) {
    %c0_i32 = arith.constant 0 : i32
    %c0_i32_0 = arith.constant 0 : i32
    %c0_i32_1 = arith.constant 0 : i32
    return %c0_i32, %c0_i32_0 : i32, i32
  }
  func.func @transform_4(%arg0: i32) -> (i32, i32) {
    %c0_i32 = arith.constant 0 : i32
    %c0_i32_0 = arith.constant 0 : i32
    %c0_i32_1 = arith.constant 0 : i32
    return %c0_i32, %c0_i32_0 : i32, i32
  }
  func.func @transform_5(%arg0: i32) -> (i32, i32) {
    %c0_i32 = arith.constant 0 : i32
    %c0_i32_0 = arith.constant 0 : i32
    return %arg0, %c0_i32 : i32, i32
  }
}

module attributes {stable_mosaic.version = 11 : i64} {
  func.func @kernel(%arg0: i32, %arg1: memref<16x32xf32, #tpu.memory_space<vmem>>, %arg2: memref<32x64xf32, #tpu.memory_space<vmem>>, %arg3: memref<1x64xf32, #tpu.memory_space<vmem>>, %arg4: memref<64x32xf32, #tpu.memory_space<vmem>>, %arg5: memref<1x32xf32, #tpu.memory_space<vmem>>, %arg6: memref<16x32xf32, #tpu.memory_space<vmem>>) attributes {dimension_semantics = [#tpu.dimension_semantics<parallel>], iteration_bounds = array<i64: 1>, scalar_prefetch = 0 : i64, scratch_operands = 0 : i64, tpu.core_type = #tpu.core_type<tc>, window_params = [{transform_indices = @transform_0, window_bounds = array<i64: 16, 32>}, {pipeline_mode = #tpu.pipeline_mode<synchronous>, transform_indices = @transform_1, window_bounds = array<i64: 32, 64>}, {pipeline_mode = #tpu.pipeline_mode<synchronous>, transform_indices = @transform_2, window_bounds = array<i64: 1, 64>}, {pipeline_mode = #tpu.pipeline_mode<synchronous>, transform_indices = @transform_3, window_bounds = array<i64: 64, 32>}, {pipeline_mode = #tpu.pipeline_mode<synchronous>, transform_indices = @transform_4, window_bounds = array<i64: 1, 32>}, {transform_indices = @transform_5, window_bounds = array<i64: 16, 32>}]} {
    %c0 = arith.constant 0 : index
    %c0_0 = arith.constant 0 : index
    %0 = vector.load %arg1[%c0, %c0_0] : memref<16x32xf32, #tpu.memory_space<vmem>>, vector<16x32xf32>
    %c0_1 = arith.constant 0 : index
    %c0_2 = arith.constant 0 : index
    %1 = vector.load %arg2[%c0_1, %c0_2] : memref<32x64xf32, #tpu.memory_space<vmem>>, vector<32x64xf32>
    %cst = arith.constant dense<0.000000e+00> : vector<16x64xf32>
    %2 = tpu.matmul %0, %1, %cst {dimension_numbers = #tpu.dot_dimension_numbers<[1], [0], [0], [1], [0, 0, 1, 1], [], []>} : vector<16x32xf32>, vector<32x64xf32>, vector<16x64xf32> -> vector<16x64xf32>
    %c0_3 = arith.constant 0 : index
    %c0_4 = arith.constant 0 : index
    %3 = vector.load %arg3[%c0_3, %c0_4] : memref<1x64xf32, #tpu.memory_space<vmem>>, vector<1x64xf32>
    %4 = vector.broadcast %3 : vector<1x64xf32> to vector<16x64xf32>
    %5 = arith.addf %2, %4 : vector<16x64xf32>
    %cst_5 = arith.constant 0.000000e+00 : f32
    %6 = vector.broadcast %cst_5 : f32 to vector<16x64xf32>
    %7 = arith.maximumf %5, %6 : vector<16x64xf32>
    %c0_6 = arith.constant 0 : index
    %c0_7 = arith.constant 0 : index
    %8 = vector.load %arg4[%c0_6, %c0_7] : memref<64x32xf32, #tpu.memory_space<vmem>>, vector<64x32xf32>
    %cst_8 = arith.constant dense<0.000000e+00> : vector<16x32xf32>
    %9 = tpu.matmul %7, %8, %cst_8 {dimension_numbers = #tpu.dot_dimension_numbers<[1], [0], [0], [1], [0, 0, 1, 1], [], []>} : vector<16x64xf32>, vector<64x32xf32>, vector<16x32xf32> -> vector<16x32xf32>
    %c0_9 = arith.constant 0 : index
    %c0_10 = arith.constant 0 : index
    %10 = vector.load %arg5[%c0_9, %c0_10] : memref<1x32xf32, #tpu.memory_space<vmem>>, vector<1x32xf32>
    %11 = vector.broadcast %10 : vector<1x32xf32> to vector<16x32xf32>
    %12 = arith.addf %9, %11 : vector<16x32xf32>
    %c0_11 = arith.constant 0 : index
    %c0_12 = arith.constant 0 : index
    %13 = vector.load %arg6[%c0_11, %c0_12] : memref<16x32xf32, #tpu.memory_space<vmem>>, vector<16x32xf32>
    tpu.vector_store %arg6[%c0_11, %c0_12], %12 {strides = array<i32>} : memref<16x32xf32, #tpu.memory_space<vmem>>, vector<16x32xf32>,
    return
  }
  func.func @transform_0(%arg0: i32) -> (i32, i32) {
    %c0_i32 = arith.constant 0 : i32
    %c0_i32_0 = arith.constant 0 : i32
    return %arg0, %c0_i32 : i32, i32
  }
  func.func @transform_1(%arg0: i32) -> (i32, i32) {
    %c0_i32 = arith.constant 0 : i32
    %c0_i32_0 = arith.constant 0 : i32
    %c0_i32_1 = arith.constant 0 : i32
    return %c0_i32, %c0_i32_0 : i32, i32
  }
  func.func @transform_2(%arg0: i32) -> (i32, i32) {
    %c0_i32 = arith.constant 0 : i32
    %c0_i32_0 = arith.constant 0 : i32
    %c0_i32_1 = arith.constant 0 : i32
    return %c0_i32, %c0_i32_0 : i32, i32
  }
  func.func @transform_3(%arg0: i32) -> (i32, i32) {
    %c0_i32 = arith.constant 0 : i32
    %c0_i32_0 = arith.constant 0 : i32
    %c0_i32_1 = arith.constant 0 : i32
    return %c0_i32, %c0_i32_0 : i32, i32
  }
  func.func @transform_4(%arg0: i32) -> (i32, i32) {
    %c0_i32 = arith.constant 0 : i32
    %c0_i32_0 = arith.constant 0 : i32
    %c0_i32_1 = arith.constant 0 : i32
    return %c0_i32, %c0_i32_0 : i32, i32
  }
  func.func @transform_5(%arg0: i32) -> (i32, i32) {
    %c0_i32 = arith.constant 0 : i32
    %c0_i32_0 = arith.constant 0 : i32
    return %arg0, %c0_i32 : i32, i32
  }
}

module attributes {stable_mosaic.version = 11 : i64} {
  func.func @kernel(%arg0: i32, %arg1: memref<16x32xf32, #tpu.memory_space<vmem>>, %arg2: memref<32x64xf32, #tpu.memory_space<vmem>>, %arg3: memref<1x64xf32, #tpu.memory_space<vmem>>, %arg4: memref<64x32xf32, #tpu.memory_space<vmem>>, %arg5: memref<1x32xf32, #tpu.memory_space<vmem>>, %arg6: memref<16x32xf32, #tpu.memory_space<vmem>>) attributes {dimension_semantics = [#tpu.dimension_semantics<arbitrary>], iteration_bounds = array<i64: 1>, scalar_prefetch = 0 : i64, scratch_operands = 0 : i64, tpu.core_type = #tpu.core_type<tc>, window_params = [{transform_indices = @transform_0, window_bounds = array<i64: 16, 32>}, {pipeline_mode = #tpu.pipeline_mode<synchronous>, transform_indices = @transform_1, window_bounds = array<i64: 32, 64>}, {pipeline_mode = #tpu.pipeline_mode<synchronous>, transform_indices = @transform_2, window_bounds = array<i64: 1, 64>}, {pipeline_mode = #tpu.pipeline_mode<synchronous>, transform_indices = @transform_3, window_bounds = array<i64: 64, 32>}, {pipeline_mode = #tpu.pipeline_mode<synchronous>, transform_indices = @transform_4, window_bounds = array<i64: 1, 32>}, {transform_indices = @transform_5, window_bounds = array<i64: 16, 32>}]} {
    %c0 = arith.constant 0 : index
    %c0_0 = arith.constant 0 : index
    %0 = vector.load %arg1[%c0, %c0_0] : memref<16x32xf32, #tpu.memory_space<vmem>>, vector<16x32xf32>
    %c0_1 = arith.constant 0 : index
    %c0_2 = arith.constant 0 : index
    %1 = vector.load %arg2[%c0_1, %c0_2] : memref<32x64xf32, #tpu.memory_space<vmem>>, vector<32x64xf32>
    %cst = arith.constant dense<0.000000e+00> : vector<16x64xf32>
    %2 = tpu.matmul %0, %1, %cst {dimension_numbers = #tpu.dot_dimension_numbers<[1], [0], [0], [1], [0, 0, 1, 1], [], []>} : vector<16x32xf32>, vector<32x64xf32>, vector<16x64xf32> -> vector<16x64xf32>
    %c0_3 = arith.constant 0 : index
    %c0_4 = arith.constant 0 : index
    %3 = vector.load %arg3[%c0_3, %c0_4] : memref<1x64xf32, #tpu.memory_space<vmem>>, vector<1x64xf32>
    %4 = vector.broadcast %3 : vector<1x64xf32> to vector<16x64xf32>
    %5 = arith.addf %2, %4 : vector<16x64xf32>
    %cst_5 = arith.constant 0.000000e+00 : f32
    %6 = vector.broadcast %cst_5 : f32 to vector<16x64xf32>
    %7 = arith.maximumf %5, %6 : vector<16x64xf32>
    %c0_6 = arith.constant 0 : index
    %c0_7 = arith.constant 0 : index
    %8 = vector.load %arg4[%c0_6, %c0_7] : memref<64x32xf32, #tpu.memory_space<vmem>>, vector<64x32xf32>
    %cst_8 = arith.constant dense<0.000000e+00> : vector<16x32xf32>
    %9 = tpu.matmul %7, %8, %cst_8 {dimension_numbers = #tpu.dot_dimension_numbers<[1], [0], [0], [1], [0, 0, 1, 1], [], []>} : vector<16x64xf32>, vector<64x32xf32>, vector<16x32xf32> -> vector<16x32xf32>
    %c0_9 = arith.constant 0 : index
    %c0_10 = arith.constant 0 : index
    %10 = vector.load %arg5[%c0_9, %c0_10] : memref<1x32xf32, #tpu.memory_space<vmem>>, vector<1x32xf32>
    %11 = vector.broadcast %10 : vector<1x32xf32> to vector<16x32xf32>
    %12 = arith.addf %9, %11 : vector<16x32xf32>
    %c0_11 = arith.constant 0 : index
    %c0_12 = arith.constant 0 : index
    %13 = vector.load %arg6[%c0_11, %c0_12] : memref<16x32xf32, #tpu.memory_space<vmem>>, vector<16x32xf32>
    tpu.vector_store %arg6[%c0_11, %c0_12], %12 {strides = array<i32>} : memref<16x32xf32, #tpu.memory_space<vmem>>, vector<16x32xf32>,
    return
  }
  func.func @transform_0(%arg0: i32) -> (i32, i32) {
    %c0_i32 = arith.constant 0 : i32
    %c0_i32_0 = arith.constant 0 : i32
    return %arg0, %c0_i32 : i32, i32
  }
  func.func @transform_1(%arg0: i32) -> (i32, i32) {
    %c0_i32 = arith.constant 0 : i32
    %c0_i32_0 = arith.constant 0 : i32
    %c0_i32_1 = arith.constant 0 : i32
    return %c0_i32, %c0_i32_0 : i32, i32
  }
  func.func @transform_2(%arg0: i32) -> (i32, i32) {
    %c0_i32 = arith.constant 0 : i32
    %c0_i32_0 = arith.constant 0 : i32
    %c0_i32_1 = arith.constant 0 : i32
    return %c0_i32, %c0_i32_0 : i32, i32
  }
  func.func @transform_3(%arg0: i32) -> (i32, i32) {
    %c0_i32 = arith.constant 0 : i32
    %c0_i32_0 = arith.constant 0 : i32
    %c0_i32_1 = arith.constant 0 : i32
    return %c0_i32, %c0_i32_0 : i32, i32
  }
  func.func @transform_4(%arg0: i32) -> (i32, i32) {
    %c0_i32 = arith.constant 0 : i32
    %c0_i32_0 = arith.constant 0 : i32
    %c0_i32_1 = arith.constant 0 : i32
    return %c0_i32, %c0_i32_0 : i32, i32
  }
  func.func @transform_5(%arg0: i32) -> (i32, i32) {
    %c0_i32 = arith.constant 0 : i32
    %c0_i32_0 = arith.constant 0 : i32
    return %arg0, %c0_i32 : i32, i32
  }
}

</mosaic_0001>

<llo_original>
// kernel: tpu_custom_call.1
$region0: #{tpu_custom_call.1}
  #allocation0 [shape = 'u32[]', space=smem, size = 0x4, offset = 0x4, fixed_abs, tag = 'smem constant byte address 0x4 - core index']
  #allocation1 [shape = 'u32[72,128]{1,0:T(1,128)}', space=vmem, size = 0x9000, scoped, tag = 'internal scratch']
  %s0 = inlined_call_operand.vmem [shape: f32[16,32], index: 0, kind: input, shape index: {}]
  %s1 = inlined_call_operand.vmem [shape: f32[32,64], index: 1, kind: input, shape index: {}]
  %s2 = inlined_call_operand.vmem [shape: f32[1,64], index: 2, kind: input, shape index: {}]
  %s3 = inlined_call_operand.vmem [shape: f32[64,32], index: 3, kind: input, shape index: {}]
  %s4 = inlined_call_operand.vmem [shape: f32[1,32], index: 4, kind: input, shape index: {}]
  %s5 = inlined_call_operand.hbm [shape: f32[16,32], index: 5, kind: output, shape index: {}]
  %s6 = sld [smem:[#allocation0]]
  $region30: #{tpu_custom_call.1} parent=0
    _
  %s8 = ssub.s32 1, %s6
  %s9 = scalar_select 0, %s8, %s6
  $region1: #{tpu_custom_call.1} parent=0
    #allocation2 [shape = 'u8[8192]{0}', space=vmem, size = 0x2000, scoped, tag = 'output window, operand 0, single buffered']
    #allocation3 [shape = 's32[1]{0}', space=sflag, size = 0x4, scoped, tag = 'scoped memory for tpu_custom_call.1']
    %10 = vsyncpa [#allocation3], 0
    // Predicated region
    $region2: #{tpu_custom_call.1} parent=1 // pred_check
      _
    $region3: #{tpu_custom_call.1} parent=1 // pred_check_branch
      %12 = sbr.rel (0) target = $region5
    $region4: #{tpu_custom_call.1} parent=1 // pred_region
      _
    $region5: #{tpu_custom_call.1} parent=1 // pred_fallthru
      _
    // Predicated region
    $region6: #{tpu_custom_call.1} parent=1 // pred_check
      _
    $region7: #{tpu_custom_call.1} parent=1 // pred_check_branch
      %14 = sbr.rel (0) target = $region9
    $region8: #{tpu_custom_call.1} parent=1 // pred_region
      _
    $region9: #{tpu_custom_call.1} parent=1 // pred_fallthru
      _
    // Predicated region
    $region10: #{tpu_custom_call.1} parent=1 // pred_check
      _
    $region11: #{tpu_custom_call.1} parent=1 // pred_check_branch
      %16 = sbr.rel (0) target = $region13
    $region12: #{tpu_custom_call.1} parent=1 // pred_region
      _
    $region13: #{tpu_custom_call.1} parent=1 // pred_fallthru
      _
    // Predicated region
    $region14: #{tpu_custom_call.1} parent=1 // pred_check
      _
    $region15: #{tpu_custom_call.1} parent=1 // pred_check_branch
      %18 = sbr.rel (0) target = $region17
    $region16: #{tpu_custom_call.1} parent=1 // pred_region
      _
    $region17: #{tpu_custom_call.1} parent=1 // pred_fallthru
      _
    // Predicated region
    $region18: #{tpu_custom_call.1} parent=1 // pred_check
      _
    $region19: #{tpu_custom_call.1} parent=1 // pred_check_branch
      %20 = sbr.rel (0) target = $region21
    $region20: #{tpu_custom_call.1} parent=1 // pred_region
      _
    $region21: #{tpu_custom_call.1} parent=1 // pred_fallthru
      _
    %v21 = vld [vmem:[%s0] sm:$0xff]
    %v22 = vld [vmem:[%s0 + $0x8] sm:$0xff]
    %v23 = vld [vmem:[%s1] sm:$0xff]
    %v24 = vld [vmem:[%s1 + $0x8] sm:$0xff]
    %v25 = vld [vmem:[%s1 + $0x10] sm:$0xff]
    %v26 = vld [vmem:[%s1 + $0x18] sm:$0xff]
    %v27 = vld [vmem:[%s2] sm:$0x1]
    %v29 = vperm.slane %v27, 0
    %vm31 = vcmask 261120
    %v33 = vsel %vm31, %v21, 0
    %v36 = vsel %vm31, %v22, 0
    %38 = vmatpush.msra.mxu0 0.0
    %39 = vmatpush.msra.mxu0 0.0
    %40 = vmatpush.msra.mxu0 0.0
    %41 = vmatpush.msra.mxu0 0.0
    %42 = vmatpush.msra.mxu0 0.0
    %43 = vmatpush.msra.mxu0 0.0
    %44 = vmatpush.msra.mxu0 0.0
    %45 = vmatpush.msra.mxu0 0.0
    %46 = vmatpush.msra.mxu0 0.0
    %47 = vmatpush.msra.mxu0 0.0
    %48 = vmatpush.msra.mxu0 0.0
    %49 = vmatpush.msra.mxu0 0.0
    %50 = vmatpush.msra.mxu0 %v26
    %51 = vmatpush.msra.mxu0 %v25
    %52 = vmatpush.msra.mxu0 %v24
    %53 = vmatpush.msra.mxu0 %v23
    %54 = vmatmul.f32.gmra.mxu0 %v33
    %v55 = vpop.f32.mrf.mxu0
    %v56 = vadd.f32 %v29, %v55
    %57 = vmatmul.f32.gmra.mxu0 %v36
    %v58 = vpop.f32.mrf.mxu0
    %v59 = vadd.f32 %v29, %v58
    %60 = vdwg.mxu0
    %v61 = vmax.f32 %v56, 0.0
    %v62 = vmax.f32 %v59, 0.0
    %v63 = vld [vmem:[%s3] sm:$0xff]
    %v64 = vld [vmem:[%s3 + $0x8] sm:$0xff]
    %v65 = vld [vmem:[%s3 + $0x10] sm:$0xff]
    %v66 = vld [vmem:[%s3 + $0x18] sm:$0xff]
    %v67 = vld [vmem:[%s3 + $0x20] sm:$0xff]
    %v68 = vld [vmem:[%s3 + $0x28] sm:$0xff]
    %v69 = vld [vmem:[%s3 + $0x30] sm:$0xff]
    %v70 = vld [vmem:[%s3 + $0x38] sm:$0xff]
    %v71 = vld [vmem:[%s4] sm:$0x1]
    %v73 = vperm.slane %v71, 0
    %vm75 = vcmask 523264
    %v77 = vsel %vm75, %v61, 0
    %v80 = vsel %vm75, %v62, 0
    %82 = vmatpush.msra.mxu0 0.0
    %83 = vmatpush.msra.mxu0 0.0
    %84 = vmatpush.msra.mxu0 0.0
    %85 = vmatpush.msra.mxu0 0.0
    %86 = vmatpush.msra.mxu0 0.0
    %87 = vmatpush.msra.mxu0 0.0
    %88 = vmatpush.msra.mxu0 0.0
    %89 = vmatpush.msra.mxu0 0.0
    %90 = vmatpush.msra.mxu0 %v70
    %91 = vmatpush.msra.mxu0 %v69
    %92 = vmatpush.msra.mxu0 %v68
    %93 = vmatpush.msra.mxu0 %v67
    %94 = vmatpush.msra.mxu0 %v66
    %95 = vmatpush.msra.mxu0 %v65
    %96 = vmatpush.msra.mxu0 %v64
    %97 = vmatpush.msra.mxu0 %v63
    %98 = vmatmul.f32.gmra.mxu0 %v77
    %v99 = vpop.f32.mrf.mxu0
    %v100 = vadd.f32 %v73, %v99
    %101 = vmatmul.f32.gmra.mxu0 %v80
    %v102 = vpop.f32.mrf.mxu0
    %v103 = vadd.f32 %v73, %v102
    %104 = vdwg.mxu0
    %105 = vst.msk [vmem:[#allocation2] sm:$0xff] %vm31, %v100
    %106 = vst.msk [vmem:[#allocation2 + $0x8] sm:$0xff] %vm31, %v103
    // Predicated region
    $region22: #{tpu_custom_call.1} parent=1 // pred_check
      _
    $region23: #{tpu_custom_call.1} parent=1 // pred_check_branch
      %108 = sbr.rel (0) target = $region25
    $region24: #{tpu_custom_call.1} parent=1 // pred_region
      %110 = vsyncadd [#allocation3], 0
      %s111 = sshll.u32 [#allocation2], 4
      %s112 = int_to_ptr.vmem [resolvable:$true] %s111
      %s113 = sshll.u32 %s5, 4
      %s114 = int_to_ptr.hbm [resolvable:$true] %s113
      %119 = dma.vmem_to_hbm [thread:$0]  %s112, 256, %s114, [#allocation3], 128, 128, 8
    $region25: #{tpu_custom_call.1} parent=1 // pred_fallthru
      _
    // Predicated region
    $region26: #{tpu_custom_call.1} parent=1 // pred_check
      _
    $region27: #{tpu_custom_call.1} parent=1 // pred_check_branch
      %121 = sbr.rel (0) target = $region29
    $region28: #{tpu_custom_call.1} parent=1 // pred_region
      %123 = dma.done [#allocation3], 256
    $region29: #{tpu_custom_call.1} parent=1 // pred_fallthru
      _
    %124 = vsyncpa [#allocation3], 1

// kernel: tpu_custom_call.1
$region0: #{tpu_custom_call.1}
  #allocation0 [shape = 'u32[]', space=smem, size = 0x4, offset = 0x4, fixed_abs, tag = 'smem constant byte address 0x4 - core index']
  #allocation1 [shape = 'u32[72,128]{1,0:T(1,128)}', space=vmem, size = 0x9000, scoped, tag = 'internal scratch']
  %s0 = inlined_call_operand.vmem [shape: f32[16,32], index: 0, kind: input, shape index: {}]
  %s1 = inlined_call_operand.vmem [shape: f32[32,64], index: 1, kind: input, shape index: {}]
  %s2 = inlined_call_operand.vmem [shape: f32[1,64], index: 2, kind: input, shape index: {}]
  %s3 = inlined_call_operand.vmem [shape: f32[64,32], index: 3, kind: input, shape index: {}]
  %s4 = inlined_call_operand.vmem [shape: f32[1,32], index: 4, kind: input, shape index: {}]
  %s5 = inlined_call_operand.hbm [shape: f32[16,32], index: 5, kind: output, shape index: {}]
  %s6 = sld [smem:[#allocation0]]
  $region30: #{tpu_custom_call.1} parent=0
    _
  %s8 = ssub.s32 1, %s6
  %s9 = scalar_select 0, %s8, %s6
  $region1: #{tpu_custom_call.1} parent=0
    #allocation2 [shape = 'u8[8192]{0}', space=vmem, size = 0x2000, scoped, tag = 'output window, operand 0, single buffered']
    #allocation3 [shape = 's32[1]{0}', space=sflag, size = 0x4, scoped, tag = 'scoped memory for tpu_custom_call.1']
    %10 = vsyncpa [#allocation3], 0
    // Predicated region
    $region2: #{tpu_custom_call.1} parent=1 // pred_check
      _
    $region3: #{tpu_custom_call.1} parent=1 // pred_check_branch
      %12 = sbr.rel (0) target = $region5
    $region4: #{tpu_custom_call.1} parent=1 // pred_region
      _
    $region5: #{tpu_custom_call.1} parent=1 // pred_fallthru
      _
    // Predicated region
    $region6: #{tpu_custom_call.1} parent=1 // pred_check
      _
    $region7: #{tpu_custom_call.1} parent=1 // pred_check_branch
      %14 = sbr.rel (0) target = $region9
    $region8: #{tpu_custom_call.1} parent=1 // pred_region
      _
    $region9: #{tpu_custom_call.1} parent=1 // pred_fallthru
      _
    // Predicated region
    $region10: #{tpu_custom_call.1} parent=1 // pred_check
      _
    $region11: #{tpu_custom_call.1} parent=1 // pred_check_branch
      %16 = sbr.rel (0) target = $region13
    $region12: #{tpu_custom_call.1} parent=1 // pred_region
      _
    $region13: #{tpu_custom_call.1} parent=1 // pred_fallthru
      _
    // Predicated region
    $region14: #{tpu_custom_call.1} parent=1 // pred_check
      _
    $region15: #{tpu_custom_call.1} parent=1 // pred_check_branch
      %18 = sbr.rel (0) target = $region17
    $region16: #{tpu_custom_call.1} parent=1 // pred_region
      _
    $region17: #{tpu_custom_call.1} parent=1 // pred_fallthru
      _
    // Predicated region
    $region18: #{tpu_custom_call.1} parent=1 // pred_check
      _
    $region19: #{tpu_custom_call.1} parent=1 // pred_check_branch
      %20 = sbr.rel (0) target = $region21
    $region20: #{tpu_custom_call.1} parent=1 // pred_region
      _
    $region21: #{tpu_custom_call.1} parent=1 // pred_fallthru
      _
    %v21 = vld [vmem:[%s0] sm:$0xff]
    %v22 = vld [vmem:[%s0 + $0x8] sm:$0xff]
    %v23 = vld [vmem:[%s1] sm:$0xff]
    %v24 = vld [vmem:[%s1 + $0x8] sm:$0xff]
    %v25 = vld [vmem:[%s1 + $0x10] sm:$0xff]
    %v26 = vld [vmem:[%s1 + $0x18] sm:$0xff]
    %v27 = vld [vmem:[%s2] sm:$0x1]
    %v29 = vperm.slane %v27, 0
    %vm31 = vcmask 261120
    %v33 = vsel %vm31, %v21, 0
    %v36 = vsel %vm31, %v22, 0
    %38 = vmatpush.msra.mxu0 0.0
    %39 = vmatpush.msra.mxu0 0.0
    %40 = vmatpush.msra.mxu0 0.0
    %41 = vmatpush.msra.mxu0 0.0
    %42 = vmatpush.msra.mxu0 0.0
    %43 = vmatpush.msra.mxu0 0.0
    %44 = vmatpush.msra.mxu0 0.0
    %45 = vmatpush.msra.mxu0 0.0
    %46 = vmatpush.msra.mxu0 0.0
    %47 = vmatpush.msra.mxu0 0.0
    %48 = vmatpush.msra.mxu0 0.0
    %49 = vmatpush.msra.mxu0 0.0
    %50 = vmatpush.msra.mxu0 %v26
    %51 = vmatpush.msra.mxu0 %v25
    %52 = vmatpush.msra.mxu0 %v24
    %53 = vmatpush.msra.mxu0 %v23
    %54 = vmatmul.f32.gmra.mxu0 %v33
    %v55 = vpop.f32.mrf.mxu0
    %v56 = vadd.f32 %v29, %v55
    %57 = vmatmul.f32.gmra.mxu0 %v36
    %v58 = vpop.f32.mrf.mxu0
    %v59 = vadd.f32 %v29, %v58
    %60 = vdwg.mxu0
    %v61 = vmax.f32 %v56, 0.0
    %v62 = vmax.f32 %v59, 0.0
    %v63 = vld [vmem:[%s3] sm:$0xff]
    %v64 = vld [vmem:[%s3 + $0x8] sm:$0xff]
    %v65 = vld [vmem:[%s3 + $0x10] sm:$0xff]
    %v66 = vld [vmem:[%s3 + $0x18] sm:$0xff]
    %v67 = vld [vmem:[%s3 + $0x20] sm:$0xff]
    %v68 = vld [vmem:[%s3 + $0x28] sm:$0xff]
    %v69 = vld [vmem:[%s3 + $0x30] sm:$0xff]
    %v70 = vld [vmem:[%s3 + $0x38] sm:$0xff]
    %v71 = vld [vmem:[%s4] sm:$0x1]
    %v73 = vperm.slane %v71, 0
    %vm75 = vcmask 523264
    %v77 = vsel %vm75, %v61, 0
    %v80 = vsel %vm75, %v62, 0
    %82 = vmatpush.msra.mxu0 0.0
    %83 = vmatpush.msra.mxu0 0.0
    %84 = vmatpush.msra.mxu0 0.0
    %85 = vmatpush.msra.mxu0 0.0
    %86 = vmatpush.msra.mxu0 0.0
    %87 = vmatpush.msra.mxu0 0.0
    %88 = vmatpush.msra.mxu0 0.0
    %89 = vmatpush.msra.mxu0 0.0
    %90 = vmatpush.msra.mxu0 %v70
    %91 = vmatpush.msra.mxu0 %v69
    %92 = vmatpush.msra.mxu0 %v68
    %93 = vmatpush.msra.mxu0 %v67
    %94 = vmatpush.msra.mxu0 %v66
    %95 = vmatpush.msra.mxu0 %v65
    %96 = vmatpush.msra.mxu0 %v64
    %97 = vmatpush.msra.mxu0 %v63
    %98 = vmatmul.f32.gmra.mxu0 %v77
    %v99 = vpop.f32.mrf.mxu0
    %v100 = vadd.f32 %v73, %v99
    %101 = vmatmul.f32.gmra.mxu0 %v80
    %v102 = vpop.f32.mrf.mxu0
    %v103 = vadd.f32 %v73, %v102
    %104 = vdwg.mxu0
    %105 = vst.msk [vmem:[#allocation2] sm:$0xff] %vm31, %v100
    %106 = vst.msk [vmem:[#allocation2 + $0x8] sm:$0xff] %vm31, %v103
    // Predicated region
    $region22: #{tpu_custom_call.1} parent=1 // pred_check
      _
    $region23: #{tpu_custom_call.1} parent=1 // pred_check_branch
      %108 = sbr.rel (0) target = $region25
    $region24: #{tpu_custom_call.1} parent=1 // pred_region
      %110 = vsyncadd [#allocation3], 0
      %s111 = sshll.u32 [#allocation2], 4
      %s112 = int_to_ptr.vmem [resolvable:$true] %s111
      %s113 = sshll.u32 %s5, 4
      %s114 = int_to_ptr.hbm [resolvable:$true] %s113
      %119 = dma.vmem_to_hbm [thread:$0]  %s112, 256, %s114, [#allocation3], 128, 128, 8
    $region25: #{tpu_custom_call.1} parent=1 // pred_fallthru
      _
    // Predicated region
    $region26: #{tpu_custom_call.1} parent=1 // pred_check
      _
    $region27: #{tpu_custom_call.1} parent=1 // pred_check_branch
      %121 = sbr.rel (0) target = $region29
    $region28: #{tpu_custom_call.1} parent=1 // pred_region
      %123 = dma.done [#allocation3], 256
    $region29: #{tpu_custom_call.1} parent=1 // pred_fallthru
      _
    %124 = vsyncpa [#allocation3], 1

// kernel: tpu_custom_call.1
$region0: #{tpu_custom_call.1}
  #allocation0 [shape = 'u32[]', space=smem, size = 0x4, offset = 0x4, fixed_abs, tag = 'smem constant byte address 0x4 - core index']
  #allocation1 [shape = 'u32[72,128]{1,0:T(1,128)}', space=vmem, size = 0x9000, scoped, tag = 'internal scratch']
  %s0 = inlined_call_operand.vmem [shape: f32[16,32], index: 0, kind: input, shape index: {}]
  %s1 = inlined_call_operand.vmem [shape: f32[32,64], index: 1, kind: input, shape index: {}]
  %s2 = inlined_call_operand.vmem [shape: f32[1,64], index: 2, kind: input, shape index: {}]
  %s3 = inlined_call_operand.vmem [shape: f32[64,32], index: 3, kind: input, shape index: {}]
  %s4 = inlined_call_operand.vmem [shape: f32[1,32], index: 4, kind: input, shape index: {}]
  %s5 = inlined_call_operand.hbm [shape: f32[16,32], index: 5, kind: output, shape index: {}]
  %s6 = sld [smem:[#allocation0]]
  $region30: #{tpu_custom_call.1} parent=0
    _
  %s8 = ssub.s32 1, %s6
  %s9 = scalar_select 0, %s8, %s6
  $region1: #{tpu_custom_call.1} parent=0
    #allocation2 [shape = 'u8[8192]{0}', space=vmem, size = 0x2000, scoped, tag = 'output window, operand 0, single buffered']
    #allocation3 [shape = 's32[1]{0}', space=sflag, size = 0x4, scoped, tag = 'scoped memory for tpu_custom_call.1']
    %10 = vsyncpa [#allocation3], 0
    // Predicated region
    $region2: #{tpu_custom_call.1} parent=1 // pred_check
      _
    $region3: #{tpu_custom_call.1} parent=1 // pred_check_branch
      %12 = sbr.rel (0) target = $region5
    $region4: #{tpu_custom_call.1} parent=1 // pred_region
      _
    $region5: #{tpu_custom_call.1} parent=1 // pred_fallthru
      _
    // Predicated region
    $region6: #{tpu_custom_call.1} parent=1 // pred_check
      _
    $region7: #{tpu_custom_call.1} parent=1 // pred_check_branch
      %14 = sbr.rel (0) target = $region9
    $region8: #{tpu_custom_call.1} parent=1 // pred_region
      _
    $region9: #{tpu_custom_call.1} parent=1 // pred_fallthru
      _
    // Predicated region
    $region10: #{tpu_custom_call.1} parent=1 // pred_check
      _
    $region11: #{tpu_custom_call.1} parent=1 // pred_check_branch
      %16 = sbr.rel (0) target = $region13
    $region12: #{tpu_custom_call.1} parent=1 // pred_region
      _
    $region13: #{tpu_custom_call.1} parent=1 // pred_fallthru
      _
    // Predicated region
    $region14: #{tpu_custom_call.1} parent=1 // pred_check
      _
    $region15: #{tpu_custom_call.1} parent=1 // pred_check_branch
      %18 = sbr.rel (0) target = $region17
    $region16: #{tpu_custom_call.1} parent=1 // pred_region
      _
    $region17: #{tpu_custom_call.1} parent=1 // pred_fallthru
      _
    // Predicated region
    $region18: #{tpu_custom_call.1} parent=1 // pred_check
      _
    $region19: #{tpu_custom_call.1} parent=1 // pred_check_branch
      %20 = sbr.rel (0) target = $region21
    $region20: #{tpu_custom_call.1} parent=1 // pred_region
      _
    $region21: #{tpu_custom_call.1} parent=1 // pred_fallthru
      _
    %v21 = vld [vmem:[%s0] sm:$0xff]
    %v22 = vld [vmem:[%s0 + $0x8] sm:$0xff]
    %v23 = vld [vmem:[%s1] sm:$0xff]
    %v24 = vld [vmem:[%s1 + $0x8] sm:$0xff]
    %v25 = vld [vmem:[%s1 + $0x10] sm:$0xff]
    %v26 = vld [vmem:[%s1 + $0x18] sm:$0xff]
    %v27 = vld [vmem:[%s2] sm:$0x1]
    %v29 = vperm.slane %v27, 0
    %vm31 = vcmask 261120
    %v33 = vsel %vm31, %v21, 0
    %v36 = vsel %vm31, %v22, 0
    %38 = vmatpush.msra.mxu0 0.0
    %39 = vmatpush.msra.mxu0 0.0
    %40 = vmatpush.msra.mxu0 0.0
    %41 = vmatpush.msra.mxu0 0.0
    %42 = vmatpush.msra.mxu0 0.0
    %43 = vmatpush.msra.mxu0 0.0
    %44 = vmatpush.msra.mxu0 0.0
    %45 = vmatpush.msra.mxu0 0.0
    %46 = vmatpush.msra.mxu0 0.0
    %47 = vmatpush.msra.mxu0 0.0
    %48 = vmatpush.msra.mxu0 0.0
    %49 = vmatpush.msra.mxu0 0.0
    %50 = vmatpush.msra.mxu0 %v26
    %51 = vmatpush.msra.mxu0 %v25
    %52 = vmatpush.msra.mxu0 %v24
    %53 = vmatpush.msra.mxu0 %v23
    %54 = vmatmul.f32.gmra.mxu0 %v33
    %v55 = vpop.f32.mrf.mxu0
    %v56 = vadd.f32 %v29, %v55
    %57 = vmatmul.f32.gmra.mxu0 %v36
    %v58 = vpop.f32.mrf.mxu0
    %v59 = vadd.f32 %v29, %v58
    %60 = vdwg.mxu0
    %v61 = vmax.f32 %v56, 0.0
    %v62 = vmax.f32 %v59, 0.0
    %v63 = vld [vmem:[%s3] sm:$0xff]
    %v64 = vld [vmem:[%s3 + $0x8] sm:$0xff]
    %v65 = vld [vmem:[%s3 + $0x10] sm:$0xff]
    %v66 = vld [vmem:[%s3 + $0x18] sm:$0xff]
    %v67 = vld [vmem:[%s3 + $0x20] sm:$0xff]
    %v68 = vld [vmem:[%s3 + $0x28] sm:$0xff]
    %v69 = vld [vmem:[%s3 + $0x30] sm:$0xff]
    %v70 = vld [vmem:[%s3 + $0x38] sm:$0xff]
    %v71 = vld [vmem:[%s4] sm:$0x1]
    %v73 = vperm.slane %v71, 0
    %vm75 = vcmask 523264
    %v77 = vsel %vm75, %v61, 0
    %v80 = vsel %vm75, %v62, 0
    %82 = vmatpush.msra.mxu0 0.0
    %83 = vmatpush.msra.mxu0 0.0
    %84 = vmatpush.msra.mxu0 0.0
    %85 = vmatpush.msra.mxu0 0.0
    %86 = vmatpush.msra.mxu0 0.0
    %87 = vmatpush.msra.mxu0 0.0
    %88 = vmatpush.msra.mxu0 0.0
    %89 = vmatpush.msra.mxu0 0.0
    %90 = vmatpush.msra.mxu0 %v70
    %91 = vmatpush.msra.mxu0 %v69
    %92 = vmatpush.msra.mxu0 %v68
    %93 = vmatpush.msra.mxu0 %v67
    %94 = vmatpush.msra.mxu0 %v66
    %95 = vmatpush.msra.mxu0 %v65
    %96 = vmatpush.msra.mxu0 %v64
    %97 = vmatpush.msra.mxu0 %v63
    %98 = vmatmul.f32.gmra.mxu0 %v77
    %v99 = vpop.f32.mrf.mxu0
    %v100 = vadd.f32 %v73, %v99
    %101 = vmatmul.f32.gmra.mxu0 %v80
    %v102 = vpop.f32.mrf.mxu0
    %v103 = vadd.f32 %v73, %v102
    %104 = vdwg.mxu0
    %105 = vst.msk [vmem:[#allocation2] sm:$0xff] %vm31, %v100
    %106 = vst.msk [vmem:[#allocation2 + $0x8] sm:$0xff] %vm31, %v103
    // Predicated region
    $region22: #{tpu_custom_call.1} parent=1 // pred_check
      _
    $region23: #{tpu_custom_call.1} parent=1 // pred_check_branch
      %108 = sbr.rel (0) target = $region25
    $region24: #{tpu_custom_call.1} parent=1 // pred_region
      %110 = vsyncadd [#allocation3], 0
      %s111 = sshll.u32 [#allocation2], 4
      %s112 = int_to_ptr.vmem [resolvable:$true] %s111
      %s113 = sshll.u32 %s5, 4
      %s114 = int_to_ptr.hbm [resolvable:$true] %s113
      %119 = dma.vmem_to_hbm [thread:$0]  %s112, 256, %s114, [#allocation3], 128, 128, 8
    $region25: #{tpu_custom_call.1} parent=1 // pred_fallthru
      _
    // Predicated region
    $region26: #{tpu_custom_call.1} parent=1 // pred_check
      _
    $region27: #{tpu_custom_call.1} parent=1 // pred_check_branch
      %121 = sbr.rel (0) target = $region29
    $region28: #{tpu_custom_call.1} parent=1 // pred_region
      %123 = dma.done [#allocation3], 256
    $region29: #{tpu_custom_call.1} parent=1 // pred_fallthru
      _
    %124 = vsyncpa [#allocation3], 1

</llo_original>
